<compile_context>
chip_gen: v7x
topology: tpu7x:2x2x1
jax: 0.10.0
libtpu: 0.0.40
codegen_flags: <defaults>
</compile_context>

<pallas_src>
import functools

import jax
import jax.numpy as jnp
from jax.experimental import pallas as pl
from jax.experimental.pallas import tpu as pltpu

LANE = 128
SUBLANE = 8
NEG_BIG = -1e12


def _round_up(x, m):
    return (x + m - 1) // m * m


# ---------------------------------------------------------------------------
# Kernel: dense projection with bias (nn.Linear)
# ---------------------------------------------------------------------------
def dense_bias_kernel(x_ref, w_ref, b_ref, o_ref):
    o_ref[...] = (jnp.dot(x_ref[...], w_ref[...], preferred_element_type=jnp.float32)
                  + b_ref[...])


def dense_forward(x, w, b, *, node_block=128):
    """x: [N, Fin], w: [Fin, Fout], b: [Fout]  ->  [N, Fout] (f32)."""
    N, Fin = x.shape
    Fout = w.shape[1]
    n_pad = _round_up(N, node_block)
    fin_pad = _round_up(Fin, LANE)
    f_pad = _round_up(Fout, LANE)
    nb = n_pad // node_block

    x_p = jnp.zeros((n_pad, fin_pad), jnp.float32).at[:N, :Fin].set(x)
    w_p = jnp.zeros((fin_pad, f_pad), jnp.float32).at[:Fin, :Fout].set(w)
    b_p = jnp.zeros((1, f_pad), jnp.float32).at[0, :Fout].set(b)

    out = pl.pallas_call(
        dense_bias_kernel,
        grid_spec=pltpu.PrefetchScalarGridSpec(
            num_scalar_prefetch=0,
            grid=(nb,),
            in_specs=[
                pl.BlockSpec((node_block, fin_pad), lambda i: (i, 0)),
                pl.BlockSpec((fin_pad, f_pad), lambda i: (0, 0)),
                pl.BlockSpec((1, f_pad), lambda i: (0, 0)),
            ],
            out_specs=pl.BlockSpec((node_block, f_pad), lambda i: (i, 0)),
        ),
        out_shape=jax.ShapeDtypeStruct((n_pad, f_pad), jnp.float32),
        compiler_params=pltpu.CompilerParams(dimension_semantics=("parallel",)),
    )(x_p, w_p, b_p)
    return out[:N, :Fout]


# ---------------------------------------------------------------------------
# Kernel: GAT projection + attention half-scores (all heads on grid axis 0)
# ---------------------------------------------------------------------------
def project_kernel(x_ref, w_ref, a1_ref, a2rows_ref, h_ref, s1_ref, s2_ref):
    # h = x @ W                                      [TM, F]
    h = jnp.dot(x_ref[...], w_ref[...], preferred_element_type=jnp.float32)
    h_ref[...] = h
    # s1[i] = h_i . a1                               [TM, 1]
    s1_ref[...] = jnp.dot(h, a1_ref[...], preferred_element_type=jnp.float32)
    # s2 produced lane-dense directly: a2_rows [8, F] contracted with h [TM, F]
    # over F (NT matmul) -> [8, TM]; only row 0 is live (rows 1..7 are zero).
    s2_ref[...] = jax.lax.dot_general(
        a2rows_ref[...], h, (((1,), (1,)), ((), ())),
        preferred_element_type=jnp.float32)


# ---------------------------------------------------------------------------
# Attention kernels: flash-style online softmax over column tiles
# ---------------------------------------------------------------------------
def _online_softmax_step(masked, h_ref, m_sc, l_sc, acc_sc):
    m_prev = m_sc[...]
    m_new = jnp.maximum(m_prev, jnp.max(masked, axis=-1, keepdims=True))
    corr = jnp.exp(m_prev - m_new)                      # 0 on first tile (m_prev = -inf)
    p = jnp.exp(masked - m_new)
    l_sc[...] = corr * l_sc[...] + jnp.sum(p, axis=-1, keepdims=True)
    acc_sc[...] = corr * acc_sc[...] + jnp.dot(
        p, h_ref[...], preferred_element_type=jnp.float32)
    m_sc[...] = m_new


def _finalize(out_ref, m_sc, l_sc, acc_sc, *, n_valid_cols, log_softmax_out):
    # Deferred normalization: one divide on [TM, F] instead of every [TM, TN] tile.
    l = l_sc[...]
    l_safe = jnp.where(l > 0, l, 1.0)                   # guard all-masked (padded) rows
    r = pl.reciprocal(l_safe, approx=True)              # EUP slot
    r = r * (2.0 - l_safe * r)                          # Newton refine -> ~f32 accuracy
    r = r * (2.0 - l_safe * r)
    hp = acc_sc[...] * r
    # ELU with an accurate expm1 (exp for larger |x|, 3-term Taylor near zero).
    neg = jnp.minimum(hp, 0.0)
    taylor = neg * (1.0 + 0.5 * neg * (1.0 + neg * (1.0 / 3.0)))
    em1 = jnp.where(neg > -0.03125, taylor, jnp.exp(neg) - 1.0)
    act = jnp.where(hp > 0, hp, em1)
    if log_softmax_out:
        # Fused log_softmax over the (unpadded) feature columns.
        col = jax.lax.broadcasted_iota(jnp.int32, act.shape, 1)
        z = jnp.where(col < n_valid_cols, act, -jnp.inf)
        m = jnp.max(z, axis=-1, keepdims=True)
        se = jnp.sum(jnp.exp(z - m), axis=-1, keepdims=True)
        act = z - (m + jnp.log(se))
    out_ref[...] = act


def gat_attention_adj_kernel(s1_ref, s2_ref, adj_ref, h_ref, out_ref,
                             m_sc, l_sc, acc_sc, *, alpha, n_valid_cols,
                             log_softmax_out):
    j = pl.program_id(2)

    @pl.when(j == 0)
    def _():
        m_sc[...] = jnp.full_like(m_sc, -jnp.inf)
        l_sc[...] = jnp.zeros_like(l_sc)
        acc_sc[...] = jnp.zeros_like(acc_sc)

    # e[p, q] = s1[p] + s2[q]; fused LeakyReLU + adjacency mask (one select chain).
    e = s1_ref[...] + s2_ref[0:1, :]
    lrelu = jnp.where(e > 0, e, alpha * e)
    masked = jnp.where(adj_ref[...] > 0, lrelu, jnp.float32(NEG_BIG))
    _online_softmax_step(masked, h_ref, m_sc, l_sc, acc_sc)

    # TODO(synk): F.dropout on attention probs / between GAT layers skipped (inference).

    @pl.when(j == pl.num_programs(2) - 1)
    def _():
        _finalize(out_ref, m_sc, l_sc, acc_sc,
                  n_valid_cols=n_valid_cols, log_softmax_out=log_softmax_out)


def gat_attention_span_kernel(s1_ref, s2_ref, span_q_ref, span_k_ref, h_ref, out_ref,
                              m_sc, l_sc, acc_sc, *, alpha, pad_id, n_valid_cols,
                              log_softmax_out):
    j = pl.program_id(2)

    @pl.when(j == 0)
    def _():
        m_sc[...] = jnp.full_like(m_sc, -jnp.inf)
        l_sc[...] = jnp.zeros_like(l_sc)
        acc_sc[...] = jnp.zeros_like(acc_sc)

    e = s1_ref[...] + s2_ref[0:1, :]
    lrelu = jnp.where(e > 0, e, alpha * e)
    # Span adjacency rebuilt on the fly: (span_i != pad) & (span_i == span_j).
    sq = span_q_ref[...]                                # [TM, 1]
    sk = span_k_ref[0:1, :]                             # [1, TN]
    keep = jnp.logical_and(sq != pad_id, sq == sk)
    masked = jnp.where(keep, lrelu, jnp.float32(NEG_BIG))
    _online_softmax_step(masked, h_ref, m_sc, l_sc, acc_sc)

    @pl.when(j == pl.num_programs(2) - 1)
    def _():
        _finalize(out_ref, m_sc, l_sc, acc_sc,
                  n_valid_cols=n_valid_cols, log_softmax_out=log_softmax_out)


# ---------------------------------------------------------------------------
# One GraphAttentionLayer (all heads fused) wrapper
# ---------------------------------------------------------------------------
def gat_layer_forward(x, W, a, *, alpha, adj=None, span=None, pad_id=-100,
                      log_softmax_out=False, node_block=128):
    """x: [N, Fin] f32; W: [H, Fin, Fout]; a: [H, 2*Fout, 1].
    adj: [N, N] dense adjacency  OR  span: [N] span labels (mask built in-kernel).
    Returns [N, H*Fout] with ELU applied (and log_softmax if requested)."""
    N, Fin = x.shape
    H, _, Fout = W.shape
    n_pad = _round_up(N, node_block)
    fin_pad = _round_up(Fin, LANE)
    f_pad = _round_up(Fout, LANE)
    nb = n_pad // node_block

    x_p = jnp.zeros((n_pad, fin_pad), jnp.float32).at[:N, :Fin].set(x)
    w_p = jnp.zeros((H, fin_pad, f_pad), jnp.float32).at[:, :Fin, :Fout].set(W)
    a1_p = jnp.zeros((H, f_pad, 1), jnp.float32).at[:, :Fout, :].set(a[:, :Fout, :])
    a2_p = jnp.zeros((H, SUBLANE, f_pad), jnp.float32).at[:, 0, :Fout].set(a[:, Fout:, 0])

    # --- projection + half-scores (one call for all heads) -------------------
    h, s1, s2 = pl.pallas_call(
        project_kernel,
        grid_spec=pltpu.PrefetchScalarGridSpec(
            num_scalar_prefetch=0,
            grid=(H, nb),
            in_specs=[
                pl.BlockSpec((node_block, fin_pad), lambda hh, i: (i, 0)),
                pl.BlockSpec((None, fin_pad, f_pad), lambda hh, i: (hh, 0, 0)),
                pl.BlockSpec((None, f_pad, 1), lambda hh, i: (hh, 0, 0)),
                pl.BlockSpec((None, SUBLANE, f_pad), lambda hh, i: (hh, 0, 0)),
            ],
            out_specs=[
                pl.BlockSpec((None, node_block, f_pad), lambda hh, i: (hh, i, 0)),
                pl.BlockSpec((None, node_block, 1), lambda hh, i: (hh, i, 0)),
                pl.BlockSpec((None, SUBLANE, node_block), lambda hh, i: (hh, 0, i)),
            ],
        ),
        out_shape=(
            jax.ShapeDtypeStruct((H, n_pad, f_pad), jnp.float32),
            jax.ShapeDtypeStruct((H, n_pad, 1), jnp.float32),
            jax.ShapeDtypeStruct((H, SUBLANE, n_pad), jnp.float32),
        ),
        compiler_params=pltpu.CompilerParams(
            dimension_semantics=("parallel", "parallel")),
    )(x_p, w_p, a1_p, a2_p)

    # --- tiled attention: online softmax over column tiles -------------------
    if adj is not None:
        adj_p = jnp.zeros((n_pad, n_pad), jnp.float32).at[:N, :N].set(adj)
        kernel = functools.partial(gat_attention_adj_kernel, alpha=float(alpha),
                                   n_valid_cols=Fout, log_softmax_out=log_softmax_out)
        mask_specs = [pl.BlockSpec((node_block, node_block), lambda hh, i, j: (i, j))]
        mask_args = (adj_p,)
    else:
        spanf = span.astype(jnp.float32)
        pad_f = float(pad_id)
        span_q = jnp.full((n_pad, 1), pad_f, jnp.float32).at[:N, 0].set(spanf)
        span_k = jnp.full((SUBLANE, n_pad), pad_f, jnp.float32).at[0, :N].set(spanf)
        kernel = functools.partial(gat_attention_span_kernel, alpha=float(alpha),
                                   pad_id=pad_f, n_valid_cols=Fout,
                                   log_softmax_out=log_softmax_out)
        mask_specs = [pl.BlockSpec((node_block, 1), lambda hh, i, j: (i, 0)),
                      pl.BlockSpec((SUBLANE, node_block), lambda hh, i, j: (0, j))]
        mask_args = (span_q, span_k)

    out_p = pl.pallas_call(
        kernel,
        grid_spec=pltpu.PrefetchScalarGridSpec(
            num_scalar_prefetch=0,
            grid=(H, nb, nb),
            in_specs=[
                pl.BlockSpec((None, node_block, 1), lambda hh, i, j: (hh, i, 0)),       # s1
                pl.BlockSpec((None, SUBLANE, node_block), lambda hh, i, j: (hh, 0, j)), # s2
                *mask_specs,                                                            # adj/span
                pl.BlockSpec((None, node_block, f_pad), lambda hh, i, j: (hh, j, 0)),   # h cols
            ],
            out_specs=pl.BlockSpec((None, node_block, f_pad), lambda hh, i, j: (hh, i, 0)),
            scratch_shapes=[
                pltpu.VMEM((node_block, 1), jnp.float32),       # running max
                pltpu.VMEM((node_block, 1), jnp.float32),       # running sum
                pltpu.VMEM((node_block, f_pad), jnp.float32),   # output accumulator
            ],
        ),
        out_shape=jax.ShapeDtypeStruct((H, n_pad, f_pad), jnp.float32),
        compiler_params=pltpu.CompilerParams(
            dimension_semantics=("parallel", "parallel", "arbitrary"),
            vmem_limit_bytes=32 * 1024 * 1024,
        ),
    )(s1, s2, *mask_args, h)

    # Concatenate heads along features (matches torch.cat([...], dim=2)).
    out = out_p[:, :N, :Fout]                            # [H, N, Fout]
    return jnp.transpose(out, (1, 0, 2)).reshape(N, H * Fout)


# ---------------------------------------------------------------------------
# GAT module and Span_Classifier_Dep_New forward
# ---------------------------------------------------------------------------
def gat_forward(x, gat_params, *, adj=None, span=None, pad_id=-100, node_block=128):
    """Multi-head layer (concat + ELU) -> out layer -> ELU -> log_softmax."""
    alpha = gat_params["alpha"]
    x1 = gat_layer_forward(x, gat_params["Wh"], gat_params["ah"], alpha=alpha,
                           adj=adj, span=span, pad_id=pad_id, node_block=node_block)
    # F.dropout between GAT layers is identity on the inference path.
    return gat_layer_forward(x1, gat_params["Wo"], gat_params["ao"], alpha=alpha,
                             adj=adj, span=span, pad_id=pad_id,
                             log_softmax_out=True, node_block=node_block)


def span_classifier_dep_forward(sequence_outputs, con_spans, dep, params,
                                pad_token_label_id=-100):
    """sequence_outputs: [1, N, bert_hidden]; con_spans: [1, N] int; dep: [1, N, N]."""
    x = sequence_outputs[0].astype(jnp.float32)
    # TODO(synk): nn.Dropout(0.1) on the sequence output skipped (inference path).
    bert_out = dense_forward(x, params["dense_w"], params["dense_b"])
    adj = (dep[0] if dep.ndim == 3 else dep).astype(jnp.float32)
    graph_out_t = gat_forward(x, params["gat"], adj=adj)
    spans = con_spans[0] if con_spans.ndim == 2 else con_spans
    graph_out_s = gat_forward(x, params["gat"], span=spans, pad_id=pad_token_label_id)
    return bert_out[None], graph_out_t[None], graph_out_s[None]


# ---------------------------------------------------------------------------
# Pure-JAX reference (mirrors the torch module)
# ---------------------------------------------------------------------------
def _gat_layer_ref(inp, W, a, adj, alpha, concat):
    h = jnp.einsum("bnf,bfo->bno", inp, W)
    B, N, Fout = h.shape
    a_input = jnp.concatenate(
        [jnp.tile(h, (1, 1, N)).reshape(B, N * N, Fout),
         jnp.tile(h, (1, N, 1))], axis=2).reshape(B, N, N, 2 * Fout)
    e = jnp.squeeze(a_input @ a, axis=3)
    e = jnp.where(e > 0, e, alpha * e)
    att = jnp.where(adj[None] > 0, e, NEG_BIG * jnp.ones_like(e))
    att = jax.nn.softmax(att, axis=2)
    h_prime = att @ h
    return jax.nn.elu(h_prime) if concat else h_prime


def _gat_ref(x, gat_params, adj):
    Wh, ah = gat_params["Wh"], gat_params["ah"]
    Wo, ao = gat_params["Wo"], gat_params["ao"]
    alpha = gat_params["alpha"]
    heads = [_gat_layer_ref(x, Wh[h:h + 1], ah[h], adj, alpha, True)
             for h in range(Wh.shape[0])]
    x1 = jnp.concatenate(heads, axis=2)
    out = jax.nn.elu(_gat_layer_ref(x1, Wo, ao[0], adj, alpha, False))
    return jax.nn.log_softmax(out, axis=2)


def _span_matrix_ref(span, pad_id):
    mask = (span != pad_id).astype(jnp.float32)[:, None]
    same = (span[:, None] == span[None, :]).astype(jnp.float32)
    return mask * same


def _span_classifier_ref(sequence_outputs, con_spans, dep, params, pad_id=-100):
    x = sequence_outputs.astype(jnp.float32)
    bert_out = jnp.einsum("bnf,fo->bno", x, params["dense_w"]) + params["dense_b"]
    adj = (dep[0] if dep.ndim == 3 else dep).astype(jnp.float32)
    g_t = _gat_ref(x, params["gat"], adj)
    g_s = _gat_ref(x, params["gat"], _span_matrix_ref(con_spans[0], pad_id))
    return bert_out, g_t, g_s


# ---------------------------------------------------------------------------
# Deterministic example inputs + self-check
# ---------------------------------------------------------------------------
def _xavier(key, shape, gain=1.414):
    fan_in, fan_out = shape[-2], shape[-1]
    bound = gain * (6.0 / (fan_in + fan_out)) ** 0.5
    return jax.random.uniform(key, shape, jnp.float32, -bound, bound)


def make_params_and_inputs(key, N, bert_hidden, hidden, n_heads):
    ks = jax.random.split(key, 9)
    params = {
        "dense_w": _xavier(ks[0], (bert_hidden, hidden), gain=1.0),
        "dense_b": jax.random.normal(ks[1], (hidden,), jnp.float32) * 0.02,
        "gat": {
            "alpha": 1.0,  # Span_Classifier_Dep_New uses GAT(..., alpha=1, n_heads=3)
            "Wh": _xavier(ks[2], (n_heads, bert_hidden, hidden)),
            "ah": _xavier(ks[3], (n_heads, 2 * hidden, 1)),
            "Wo": _xavier(ks[4], (1, n_heads * hidden, hidden)),
            "ao": _xavier(ks[5], (1, 2 * hidden, 1)),
        },
    }
    seq = jax.random.normal(ks[6], (1, N, bert_hidden), jnp.float32)
    # dependency adjacency: random binary with self-loops (every softmax row has support)
    dep = (jax.random.uniform(ks[7], (N, N)) > 0.5).astype(jnp.float32)
    dep = jnp.maximum(dep, jnp.eye(N, dtype=jnp.float32))[None]
    # constituency spans: small non-pad labels
    spans = jax.random.randint(ks[8], (1, N), 0, 6, jnp.int32)
    return params, seq, spans, dep


if __name__ == "__main__":
    key = jax.random.PRNGKey(0)
    bert_hidden, hidden, n_heads = 64, 32, 3
    # Small single-tile case and a multi-tile case exercising the (3, 2, 2) grid,
    # the online softmax across column tiles, and padded-row/column handling.
    for N in (40, 200):
        key, sub = jax.random.split(key)
        params, seq, spans, dep = make_params_and_inputs(sub, N, bert_hidden, hidden, n_heads)
        outs = jax.block_until_ready(span_classifier_dep_forward(seq, spans, dep, params))
        refs = _span_classifier_ref(seq, spans, dep, params)
        names = ("bert_out", "graph_out_t", "graph_out_s")
        tols = ((1e-3, 1e-3), (5e-3, 5e-3), (5e-3, 5e-3))
        for o, r, name, (atol, rtol) in zip(outs, refs, names, tols):
            assert o.shape == r.shape, (name, o.shape, r.shape)
            assert jnp.allclose(o, r, atol=atol, rtol=rtol), f"{name} mismatch (N={N})"
    print("KERNEL_OK")
</pallas_src>

<mosaic_0001>
module attributes {stable_mosaic.version = 11 : i64} {
  func.func @dense_bias_kernel(%arg0: i32, %arg1: memref<128x128xf32, #tpu.memory_space<vmem>>, %arg2: memref<128x128xf32, #tpu.memory_space<vmem>>, %arg3: memref<1x128xf32, #tpu.memory_space<vmem>>, %arg4: memref<128x128xf32, #tpu.memory_space<vmem>>) attributes {dimension_semantics = [#tpu.dimension_semantics<parallel>], iteration_bounds = array<i64: 1>, scalar_prefetch = 0 : i64, scratch_operands = 0 : i64, tpu.core_type = #tpu.core_type<tc>, window_params = [{transform_indices = @transform_0, window_bounds = array<i64: 128, 128>}, {pipeline_mode = #tpu.pipeline_mode<synchronous>, transform_indices = @transform_1, window_bounds = array<i64: 128, 128>}, {pipeline_mode = #tpu.pipeline_mode<synchronous>, transform_indices = @transform_2, window_bounds = array<i64: 1, 128>}, {transform_indices = @transform_3, window_bounds = array<i64: 128, 128>}]} {
    %c0 = arith.constant 0 : index
    %c0_0 = arith.constant 0 : index
    %0 = vector.load %arg1[%c0, %c0_0] : memref<128x128xf32, #tpu.memory_space<vmem>>, vector<128x128xf32>
    %c0_1 = arith.constant 0 : index
    %c0_2 = arith.constant 0 : index
    %1 = vector.load %arg2[%c0_1, %c0_2] : memref<128x128xf32, #tpu.memory_space<vmem>>, vector<128x128xf32>
    %cst = arith.constant dense<0.000000e+00> : vector<128x128xf32>
    %2 = tpu.matmul %0, %1, %cst {dimension_numbers = #tpu.dot_dimension_numbers<[1], [0], [0], [1], [0, 0, 1, 1], [], []>} : vector<128x128xf32>, vector<128x128xf32>, vector<128x128xf32> -> vector<128x128xf32>
    %c0_3 = arith.constant 0 : index
    %c0_4 = arith.constant 0 : index
    %3 = vector.load %arg3[%c0_3, %c0_4] : memref<1x128xf32, #tpu.memory_space<vmem>>, vector<1x128xf32>
    %4 = vector.broadcast %3 : vector<1x128xf32> to vector<128x128xf32>
    %5 = arith.addf %2, %4 : vector<128x128xf32>
    %c0_5 = arith.constant 0 : index
    %c0_6 = arith.constant 0 : index
    %6 = vector.load %arg4[%c0_5, %c0_6] : memref<128x128xf32, #tpu.memory_space<vmem>>, vector<128x128xf32>
    tpu.vector_store %arg4[%c0_5, %c0_6], %5 {strides = array<i32>} : memref<128x128xf32, #tpu.memory_space<vmem>>, vector<128x128xf32>,
    return
  }
  func.func @transform_0(%arg0: i32) -> (i32, i32) {
    %c0_i32 = arith.constant 0 : i32
    %c0_i32_0 = arith.constant 0 : i32
    return %arg0, %c0_i32 : i32, i32
  }
  func.func @transform_1(%arg0: i32) -> (i32, i32) {
    %c0_i32 = arith.constant 0 : i32
    %c0_i32_0 = arith.constant 0 : i32
    %c0_i32_1 = arith.constant 0 : i32
    return %c0_i32, %c0_i32_0 : i32, i32
  }
  func.func @transform_2(%arg0: i32) -> (i32, i32) {
    %c0_i32 = arith.constant 0 : i32
    %c0_i32_0 = arith.constant 0 : i32
    %c0_i32_1 = arith.constant 0 : i32
    return %c0_i32, %c0_i32_0 : i32, i32
  }
  func.func @transform_3(%arg0: i32) -> (i32, i32) {
    %c0_i32 = arith.constant 0 : i32
    %c0_i32_0 = arith.constant 0 : i32
    return %arg0, %c0_i32 : i32, i32
  }
}

</mosaic_0001>

<llo_original>
// kernel: tpu_custom_call.1
$region0: #{tpu_custom_call.1}
  #allocation0 [shape = 'u32[]', space=smem, size = 0x4, offset = 0x4, fixed_abs, tag = 'smem constant byte address 0x4 - core index']
  #allocation1 [shape = 'u32[144,128]{1,0:T(1,128)}', space=vmem, size = 0x12000, scoped, tag = 'internal scratch']
  %s0 = inlined_call_operand.hbm [shape: f32[128,128], index: 0, kind: input, shape index: {}]
  %s1 = inlined_call_operand.hbm [shape: f32[128,128], index: 1, kind: input, shape index: {}]
  %s2 = inlined_call_operand.vmem [shape: f32[1,128], index: 2, kind: input, shape index: {}]
  %s3 = inlined_call_operand.hbm [shape: f32[128,128], index: 3, kind: output, shape index: {}]
  %s4 = sld [smem:[#allocation0]]
  $region30: #{tpu_custom_call.1} parent=0
    _
  %s6 = ssub.s32 1, %s4
  %s7 = scalar_select 0, %s6, %s4
  $region1: #{tpu_custom_call.1} parent=0
    #allocation2 [shape = 'u8[65536]{0}', space=vmem, size = 0x10000, scoped, tag = 'input window, operand 0, single buffered']
    #allocation3 [shape = 's32[1]{0}', space=sflag, size = 0x4, scoped, tag = 'scoped memory for tpu_custom_call.1']
    #allocation4 [shape = 's32[1]{0}', space=sflag, size = 0x4, scoped, tag = 'scoped memory for tpu_custom_call.1']
    #allocation5 [shape = 'u8[65536]{0}', space=vmem, size = 0x10000, scoped, tag = 'input window, operand 1, single buffered']
    #allocation6 [shape = 's32[1]{0}', space=sflag, size = 0x4, scoped, tag = 'scoped memory for tpu_custom_call.1']
    #allocation7 [shape = 'u8[65536]{0}', space=vmem, size = 0x10000, scoped, tag = 'output window, operand 0, single buffered']
    %8 = vsyncpa [#allocation3], 0
    %9 = vsyncpa [#allocation6], 0
    %10 = vsyncpa [#allocation4], 0
    // Predicated region
    $region2: #{tpu_custom_call.1} parent=1 // pred_check
      _
    $region3: #{tpu_custom_call.1} parent=1 // pred_check_branch
      %12 = sbr.rel (0) target = $region5
    $region4: #{tpu_custom_call.1} parent=1 // pred_region
      %s14 = ssub.s32 2048, 2048
      %15 = vsyncadd [#allocation3], %s14
      %s16 = sshll.u32 [#allocation2], 4
      %s17 = int_to_ptr.vmem [resolvable:$true] %s16
      %22 = dma.hbm_to_vmem [thread:$0]  %s0, 2048, %s17, [#allocation3], 128, 128, 8
    $region5: #{tpu_custom_call.1} parent=1 // pred_fallthru
      _
    // Predicated region
    $region6: #{tpu_custom_call.1} parent=1 // pred_check
      _
    $region7: #{tpu_custom_call.1} parent=1 // pred_check_branch
      %24 = sbr.rel (0) target = $region9
    $region8: #{tpu_custom_call.1} parent=1 // pred_region
      %s26 = ssub.s32 2048, 2048
      %27 = vsyncadd [#allocation6], %s26
      %s28 = sshll.u32 [#allocation5], 4
      %s29 = int_to_ptr.vmem [resolvable:$true] %s28
      %34 = dma.hbm_to_vmem [thread:$0]  %s1, 2048, %s29, [#allocation6], 128, 128, 8
    $region9: #{tpu_custom_call.1} parent=1 // pred_fallthru
      _
    // Predicated region
    $region10: #{tpu_custom_call.1} parent=1 // pred_check
      _
    $region11: #{tpu_custom_call.1} parent=1 // pred_check_branch
      %36 = sbr.rel (0) target = $region13
    $region12: #{tpu_custom_call.1} parent=1 // pred_region
      _
    $region13: #{tpu_custom_call.1} parent=1 // pred_fallthru
      _
    // Predicated region
    $region14: #{tpu_custom_call.1} parent=1 // pred_check
      _
    $region15: #{tpu_custom_call.1} parent=1 // pred_check_branch
      %38 = sbr.rel (0) target = $region17
    $region16: #{tpu_custom_call.1} parent=1 // pred_region
      %39 = dma.done [#allocation3], 2048
    $region17: #{tpu_custom_call.1} parent=1 // pred_fallthru
      _
    // Predicated region
    $region18: #{tpu_custom_call.1} parent=1 // pred_check
      _
    $region19: #{tpu_custom_call.1} parent=1 // pred_check_branch
      %41 = sbr.rel (0) target = $region21
    $region20: #{tpu_custom_call.1} parent=1 // pred_region
      %42 = dma.done [#allocation6], 2048
    $region21: #{tpu_custom_call.1} parent=1 // pred_fallthru
      _
    %v43 = vld [vmem:[#allocation2] sm:$0xff]
    %v44 = vld [vmem:[#allocation2 + $0x8] sm:$0xff]
    %v45 = vld [vmem:[#allocation2 + $0x10] sm:$0xff]
    %v46 = vld [vmem:[#allocation2 + $0x18] sm:$0xff]
    %v47 = vld [vmem:[#allocation2 + $0x20] sm:$0xff]
    %v48 = vld [vmem:[#allocation2 + $0x28] sm:$0xff]
    %v49 = vld [vmem:[#allocation2 + $0x30] sm:$0xff]
    %v50 = vld [vmem:[#allocation2 + $0x38] sm:$0xff]
    %v51 = vld [vmem:[#allocation2 + $0x40] sm:$0xff]
    %v52 = vld [vmem:[#allocation2 + $0x48] sm:$0xff]
    %v53 = vld [vmem:[#allocation2 + $0x50] sm:$0xff]
    %v54 = vld [vmem:[#allocation2 + $0x58] sm:$0xff]
    %v55 = vld [vmem:[#allocation2 + $0x60] sm:$0xff]
    %v56 = vld [vmem:[#allocation2 + $0x68] sm:$0xff]
    %v57 = vld [vmem:[#allocation2 + $0x70] sm:$0xff]
    %v58 = vld [vmem:[#allocation2 + $0x78] sm:$0xff]
    %v59 = vld [vmem:[#allocation5] sm:$0xff]
    %v60 = vld [vmem:[#allocation5 + $0x8] sm:$0xff]
    %v61 = vld [vmem:[#allocation5 + $0x10] sm:$0xff]
    %v62 = vld [vmem:[#allocation5 + $0x18] sm:$0xff]
    %v63 = vld [vmem:[#allocation5 + $0x20] sm:$0xff]
    %v64 = vld [vmem:[#allocation5 + $0x28] sm:$0xff]
    %v65 = vld [vmem:[#allocation5 + $0x30] sm:$0xff]
    %v66 = vld [vmem:[#allocation5 + $0x38] sm:$0xff]
    %v67 = vld [vmem:[#allocation5 + $0x40] sm:$0xff]
    %v68 = vld [vmem:[#allocation5 + $0x48] sm:$0xff]
    %v69 = vld [vmem:[#allocation5 + $0x50] sm:$0xff]
    %v70 = vld [vmem:[#allocation5 + $0x58] sm:$0xff]
    %v71 = vld [vmem:[#allocation5 + $0x60] sm:$0xff]
    %v72 = vld [vmem:[#allocation5 + $0x68] sm:$0xff]
    %v73 = vld [vmem:[#allocation5 + $0x70] sm:$0xff]
    %v74 = vld [vmem:[#allocation5 + $0x78] sm:$0xff]
    %v75 = vld [vmem:[%s2] sm:$0x1]
    %v77 = vlaneseq
    %v78 = vshrl.u32 %v77, 7
    %v79 = vsub.s32 0, %v78
    %v80 = vrot.slane %v75, %v79
    %82 = vmatprep.subr.mxu0 0.0
    %83 = vmatpush1.msra.mxu0 %v59
    %84 = vmatprep.subr.mxu0 0.0
    %85 = vmatpush1.msra.mxu0 %v60
    %86 = vmatprep.subr.mxu0 0.0
    %87 = vmatpush1.msra.mxu0 %v61
    %88 = vmatprep.subr.mxu0 0.0
    %89 = vmatpush1.msra.mxu0 %v62
    %90 = vmatprep.subr.mxu0 0.0
    %91 = vmatpush1.msra.mxu0 %v63
    %92 = vmatprep.subr.mxu0 0.0
    %93 = vmatpush1.msra.mxu0 %v64
    %94 = vmatprep.subr.mxu0 0.0
    %95 = vmatpush1.msra.mxu0 %v65
    %96 = vmatprep.subr.mxu0 0.0
    %97 = vmatpush1.msra.mxu0 %v66
    %98 = vmatprep.subr.mxu0 0.0
    %99 = vmatpush1.msra.mxu0 %v67
    %100 = vmatprep.subr.mxu0 0.0
    %101 = vmatpush1.msra.mxu0 %v68
    %102 = vmatprep.subr.mxu0 0.0
    %103 = vmatpush1.msra.mxu0 %v69
    %104 = vmatprep.subr.mxu0 0.0
    %105 = vmatpush1.msra.mxu0 %v70
    %106 = vmatprep.subr.mxu0 0.0
    %107 = vmatpush1.msra.mxu0 %v71
    %108 = vmatprep.subr.mxu0 0.0
    %109 = vmatpush1.msra.mxu0 %v72
    %110 = vmatprep.subr.mxu0 0.0
    %111 = vmatpush1.msra.mxu0 %v73
    %112 = vmatprep.subr.mxu0 0.0
    %113 = vmatpush1.msra.mxu0 %v74
    %114 = vmatprep.subr.mxu0 0.0
    %115 = vmatpush1.msra.mxu0 0.0
    %116 = vmatprep.subr.mxu0 0.0
    %117 = vmatpush1.msra.mxu0 0.0
    %118 = vmatprep.subr.mxu0 0.0
    %119 = vmatpush1.msra.mxu0 0.0
    %120 = vmatprep.subr.mxu0 0.0
    %121 = vmatpush1.msra.mxu0 0.0
    %122 = vmatprep.subr.mxu0 0.0
    %123 = vmatpush1.msra.mxu0 0.0
    %124 = vmatprep.subr.mxu0 0.0
    %125 = vmatpush1.msra.mxu0 0.0
    %126 = vmatprep.subr.mxu0 0.0
    %127 = vmatpush1.msra.mxu0 0.0
    %128 = vmatprep.subr.mxu0 0.0
    %129 = vmatpush1.msra.mxu0 0.0
    %130 = vmatprep.subr.mxu0 0.0
    %131 = vmatpush1.msra.mxu0 0.0
    %132 = vmatprep.subr.mxu0 0.0
    %133 = vmatpush1.msra.mxu0 0.0
    %134 = vmatprep.subr.mxu0 0.0
    %135 = vmatpush1.msra.mxu0 0.0
    %136 = vmatprep.subr.mxu0 0.0
    %137 = vmatpush1.msra.mxu0 0.0
    %138 = vmatprep.subr.mxu0 0.0
    %139 = vmatpush1.msra.mxu0 0.0
    %140 = vmatprep.subr.mxu0 0.0
    %141 = vmatpush1.msra.mxu0 0.0
    %142 = vmatprep.subr.mxu0 0.0
    %143 = vmatpush1.msra.mxu0 0.0
    %144 = vmatprep.subr.mxu0 0.0
    %145 = vmatpush1.msra.mxu0 0.0
    %146 = vmatprep.mubr.f32.mxu0 0.0
    %147 = vmatmul.mubr.f32.gmra.mrb[0].mxu0 %v43
    %v148 = vpop.f32.mrb[0].mxu0
    %v149 = vadd.f32 %v80, %v148
    %v150 = vpop.f32.mrb[0].mxu0
    %151 = vmatprep.mubr.f32.mxu0 0.0
    %152 = vmatmul.mubr.f32.gmra.mrb[0].mxu0 %v44
    %v153 = vpop.f32.mrb[0].mxu0
    %v154 = vadd.f32 %v80, %v153
    %v155 = vpop.f32.mrb[0].mxu0
    %156 = vmatprep.mubr.f32.mxu0 0.0
    %157 = vmatmul.mubr.f32.gmra.mrb[0].mxu0 %v45
    %v158 = vpop.f32.mrb[0].mxu0
    %v159 = vadd.f32 %v80, %v158
    %v160 = vpop.f32.mrb[0].mxu0
    %161 = vmatprep.mubr.f32.mxu0 0.0
    %162 = vmatmul.mubr.f32.gmra.mrb[0].mxu0 %v46
    %v163 = vpop.f32.mrb[0].mxu0
    %v164 = vadd.f32 %v80, %v163
    %v165 = vpop.f32.mrb[0].mxu0
    %166 = vmatprep.mubr.f32.mxu0 0.0
    %167 = vmatmul.mubr.f32.gmra.mrb[0].mxu0 %v47
    %v168 = vpop.f32.mrb[0].mxu0
    %v169 = vadd.f32 %v80, %v168
    %v170 = vpop.f32.mrb[0].mxu0
    %171 = vmatprep.mubr.f32.mxu0 0.0
    %172 = vmatmul.mubr.f32.gmra.mrb[0].mxu0 %v48
    %v173 = vpop.f32.mrb[0].mxu0
    %v174 = vadd.f32 %v80, %v173
    %v175 = vpop.f32.mrb[0].mxu0
    %176 = vmatprep.mubr.f32.mxu0 0.0
    %177 = vmatmul.mubr.f32.gmra.mrb[0].mxu0 %v49
    %v178 = vpop.f32.mrb[0].mxu0
    %v179 = vadd.f32 %v80, %v178
    %v180 = vpop.f32.mrb[0].mxu0
    %181 = vmatprep.mubr.f32.mxu0 0.0
    %182 = vmatmul.mubr.f32.gmra.mrb[0].mxu0 %v50
    %v183 = vpop.f32.mrb[0].mxu0
    %v184 = vadd.f32 %v80, %v183
    %v185 = vpop.f32.mrb[0].mxu0
    %186 = vmatprep.mubr.f32.mxu0 0.0
    %187 = vmatmul.mubr.f32.gmra.mrb[0].mxu0 %v51
    %v188 = vpop.f32.mrb[0].mxu0
    %v189 = vadd.f32 %v80, %v188
    %v190 = vpop.f32.mrb[0].mxu0
    %191 = vmatprep.mubr.f32.mxu0 0.0
    %192 = vmatmul.mubr.f32.gmra.mrb[0].mxu0 %v52
    %v193 = vpop.f32.mrb[0].mxu0
    %v194 = vadd.f32 %v80, %v193
    %v195 = vpop.f32.mrb[0].mxu0
    %196 = vmatprep.mubr.f32.mxu0 0.0
    %197 = vmatmul.mubr.f32.gmra.mrb[0].mxu0 %v53
    %v198 = vpop.f32.mrb[0].mxu0
    %v199 = vadd.f32 %v80, %v198
    %v200 = vpop.f32.mrb[0].mxu0
    %201 = vmatprep.mubr.f32.mxu0 0.0
    %202 = vmatmul.mubr.f32.gmra.mrb[0].mxu0 %v54
    %v203 = vpop.f32.mrb[0].mxu0
    %v204 = vadd.f32 %v80, %v203
    %v205 = vpop.f32.mrb[0].mxu0
    %206 = vmatprep.mubr.f32.mxu0 0.0
    %207 = vmatmul.mubr.f32.gmra.mrb[0].mxu0 %v55
    %v208 = vpop.f32.mrb[0].mxu0
    %v209 = vadd.f32 %v80, %v208
    %v210 = vpop.f32.mrb[0].mxu0
    %211 = vmatprep.mubr.f32.mxu0 0.0
    %212 = vmatmul.mubr.f32.gmra.mrb[0].mxu0 %v56
    %v213 = vpop.f32.mrb[0].mxu0
    %v214 = vadd.f32 %v80, %v213
    %v215 = vpop.f32.mrb[0].mxu0
    %216 = vmatprep.mubr.f32.mxu0 0.0
    %217 = vmatmul.mubr.f32.gmra.mrb[0].mxu0 %v57
    %v218 = vpop.f32.mrb[0].mxu0
    %v219 = vadd.f32 %v80, %v218
    %v220 = vpop.f32.mrb[0].mxu0
    %221 = vmatprep.mubr.f32.mxu0 0.0
    %222 = vmatmul.mubr.f32.gmra.mrb[0].mxu0 %v58
    %v223 = vpop.f32.mrb[0].mxu0
    %v224 = vadd.f32 %v80, %v223
    %v225 = vpop.f32.mrb[0].mxu0
    %226 = vdwg.mxu0
    %227 = vst [vmem:[#allocation7] sm:$0xff] %v149
    %228 = vst [vmem:[#allocation7 + $0x8] sm:$0xff] %v154
    %229 = vst [vmem:[#allocation7 + $0x10] sm:$0xff] %v159
    %230 = vst [vmem:[#allocation7 + $0x18] sm:$0xff] %v164
    %231 = vst [vmem:[#allocation7 + $0x20] sm:$0xff] %v169
    %232 = vst [vmem:[#allocation7 + $0x28] sm:$0xff] %v174
    %233 = vst [vmem:[#allocation7 + $0x30] sm:$0xff] %v179
    %234 = vst [vmem:[#allocation7 + $0x38] sm:$0xff] %v184
    %235 = vst [vmem:[#allocation7 + $0x40] sm:$0xff] %v189
    %236 = vst [vmem:[#allocation7 + $0x48] sm:$0xff] %v194
    %237 = vst [vmem:[#allocation7 + $0x50] sm:$0xff] %v199
    %238 = vst [vmem:[#allocation7 + $0x58] sm:$0xff] %v204
    %239 = vst [vmem:[#allocation7 + $0x60] sm:$0xff] %v209
    %240 = vst [vmem:[#allocation7 + $0x68] sm:$0xff] %v214
    %241 = vst [vmem:[#allocation7 + $0x70] sm:$0xff] %v219
    %242 = vst [vmem:[#allocation7 + $0x78] sm:$0xff] %v224
    // Predicated region
    $region22: #{tpu_custom_call.1} parent=1 // pred_check
      _
    $region23: #{tpu_custom_call.1} parent=1 // pred_check_branch
      %244 = sbr.rel (0) target = $region25
    $region24: #{tpu_custom_call.1} parent=1 // pred_region
      %s246 = ssub.s32 2048, 2048
      %247 = vsyncadd [#allocation4], %s246
      %s248 = sshll.u32 [#allocation7], 4
      %s249 = int_to_ptr.vmem [resolvable:$true] %s248
      %254 = dma.vmem_to_hbm [thread:$0]  %s249, 2048, %s3, [#allocation4], 128, 128, 8
    $region25: #{tpu_custom_call.1} parent=1 // pred_fallthru
      _
    // Predicated region
    $region26: #{tpu_custom_call.1} parent=1 // pred_check
      _
    $region27: #{tpu_custom_call.1} parent=1 // pred_check_branch
      %256 = sbr.rel (0) target = $region29
    $region28: #{tpu_custom_call.1} parent=1 // pred_region
      %257 = dma.done [#allocation4], 2048
    $region29: #{tpu_custom_call.1} parent=1 // pred_fallthru
      _
    %258 = vsyncpa [#allocation3], 1
    %259 = vsyncpa [#allocation6], 1
    %260 = vsyncpa [#allocation4], 1

</llo_original>
